<compile_context>
chip_gen: v7x
topology: tpu7x:2x2x1
jax: 0.10.0
libtpu: 0.0.40
codegen_flags: <defaults>
</compile_context>

<pallas_src>
import functools

import jax
import jax.numpy as jnp
from jax.experimental import pallas as pl
from jax.experimental.pallas import tpu as pltpu


def _stats_pool_kernel(x_ref, o_ref, sum_acc, sq_acc, shift_acc,
                       *, t_total, tt, needs_mask):
    """One (TB, C, TT) time tile of one batch-row group.

    x_ref:     (TB, C, TT) input tile
    o_ref:     (TB, 2, C)  output (mean plane, std plane); written at finalize
    sum_acc:   (TB, C)     f32 running sum of shifted values (per-tile reduced)
    sq_acc:    (TB, C)     f32 running sum of squared shifted values
    shift_acc: (TB, C, 1)  f32 per-channel shift (mean of first time tile),
                           kept lane-broadcast friendly
    """
    ti = pl.program_id(1)
    nt = pl.num_programs(1)

    x = x_ref[...].astype(jnp.float32)                  # (TB, C, TT)

    @pl.when(ti == 0)
    def _init():
        # Tile 0 is always fully in-bounds (tt <= T; a ragged tile can only be
        # the last one, and then nt >= 2), so an unmasked mean is safe.  The
        # shift kills catastrophic cancellation in the one-pass variance.
        shift_acc[...] = jnp.mean(x, axis=-1, keepdims=True)
        sum_acc[...] = jnp.zeros_like(sum_acc)
        sq_acc[...] = jnp.zeros_like(sq_acc)

    y = x - shift_acc[...]                              # pure lane splat

    def _accumulate(yy):
        # One lane (XLU) reduce per tile into tiny accumulators; the XLU slot
        # is otherwise idle since the kernel is HBM-bound, so this is free,
        # and it removes the big f32 accumulator load/store streams.
        sum_acc[...] += jnp.sum(yy, axis=-1)
        sq_acc[...] += jnp.sum(yy * yy, axis=-1)

    if needs_mask:
        rem = t_total - (t_total // tt) * tt            # static last-tile length

        @pl.when(ti == nt - 1)
        def _ragged():
            pos = jax.lax.broadcasted_iota(jnp.int32, y.shape, 2)
            _accumulate(jnp.where(pos < rem, y, 0.0))

        @pl.when(ti != nt - 1)
        def _full():
            _accumulate(y)
    else:
        _accumulate(y)

    @pl.when(ti == nt - 1)
    def _finalize():
        n = jnp.float32(t_total)
        s = sum_acc[...]                                # (TB, C)
        q = sq_acc[...]                                 # (TB, C)
        shift = shift_acc[...][:, :, 0]                 # one relayout per group
        mean = shift + s / n
        # Unbiased variance (torch.std default, N-1 denominator).
        var = (q - s * s / n) / (n - 1.0)
        std = jnp.sqrt(jnp.maximum(var, 0.0))
        o_ref[:, 0:1, :] = mean[:, None, :].astype(o_ref.dtype)
        o_ref[:, 1:2, :] = std[:, None, :].astype(o_ref.dtype)


def statistics_pooling(x, *, tb=None, tt=None, vmem_budget_bytes=None):
    """x: (B, C, T) -> (B, 2*C), [:, :C] = mean over T, [:, C:] = unbiased std."""
    B, C, T = x.shape
    in_bytes = jnp.dtype(x.dtype).itemsize

    # ---- generation-aware VMEM budget (v7x: 64 MiB, v5e/v6e: 128 MiB) -----
    try:
        vmem_cap = int(pltpu.get_tpu_info().vmem_capacity_bytes)
    except Exception:
        vmem_cap = 64 * 1024 * 1024
    if vmem_budget_bytes is None:
        vmem_budget_bytes = min(int(vmem_cap * 0.6), 64 * 1024 * 1024)
    else:
        vmem_budget_bytes = min(int(vmem_budget_bytes), int(vmem_cap * 0.75))

    # ---- batch tiling: sized from per-step HBM traffic; no padding copy ----
    if tb is None:
        row_bytes = max(1, C * T * in_bytes)
        tb = max(1, min(B, (4 * 1024 * 1024) // row_bytes))  # ~4 MiB per step
        if B >= 2:
            # Keep >= 2 batch groups so the "parallel" axis can shard across
            # v7x's two TensorCores (no effect on v5e/v6e).
            tb = min(tb, (B + 1) // 2)
    tb = int(max(1, min(tb, B)))
    gb = pl.cdiv(B, tb)          # ragged last batch group handled by Pallas

    # ---- time tiling: largest lane-aligned tile under the VMEM budget -----
    if tt is None:
        elem_budget = max(128, vmem_budget_bytes // max(1, tb * C * 2 * in_bytes))
        tt = T if elem_budget >= T else (elem_budget // 128) * 128
    tt = int(min(tt, T))
    if tt < T and tt % 128 != 0:
        # (8,128) constraint: a partial time tile must be a multiple of 128;
        # never let rounding exceed T (keeps tile 0 always full for the shift).
        tt = max(128, (tt // 128) * 128)
        tt = min(tt, T)
    nt = pl.cdiv(T, tt)
    needs_mask = (T % tt) != 0

    # Planned VMEM (double-buffered input + output + tiny scratch) + headroom,
    # clamped below physical capacity (matters on v7x's 64 MiB).
    vmem_used = (2 * tb * C * tt * in_bytes          # input double buffer
                 + 2 * tb * 2 * C * in_bytes         # output double buffer
                 + 2 * tb * C * 4 + tb * C * 4)      # f32 accumulators + shift
    vmem_limit = int(min(max(32 * 1024 * 1024, vmem_used + 4 * 1024 * 1024),
                         int(vmem_cap * 0.9)))

    kernel = functools.partial(_stats_pool_kernel,
                               t_total=T, tt=tt, needs_mask=needs_mask)

    out = pl.pallas_call(
        kernel,
        out_shape=jax.ShapeDtypeStruct((B, 2, C), x.dtype),
        grid_spec=pltpu.PrefetchScalarGridSpec(
            num_scalar_prefetch=0,
            grid=(gb, nt),
            in_specs=[pl.BlockSpec((tb, C, tt), lambda b, t: (b, 0, t))],
            out_specs=pl.BlockSpec((tb, 2, C), lambda b, t: (b, 0, 0)),
            scratch_shapes=[
                pltpu.VMEM((tb, C), jnp.float32),      # running sum
                pltpu.VMEM((tb, C), jnp.float32),      # running sum of squares
                pltpu.VMEM((tb, C, 1), jnp.float32),   # per-channel shift
            ],
        ),
        compiler_params=pltpu.CompilerParams(
            dimension_semantics=("parallel", "arbitrary"),
            vmem_limit_bytes=vmem_limit,
        ),
        cost_estimate=pl.CostEstimate(
            flops=4 * B * C * T,
            transcendentals=B * C,
            bytes_accessed=B * C * T * in_bytes + B * 2 * C * in_bytes,
        ),
    )(x)

    # (B, 2, C) -> (B, 2C) == torch.cat([mean, std], dim=1); free reshape.
    return out.reshape(B, 2 * C)


def statistics_pooling_ref(x):
    mean = jnp.mean(x, axis=2)
    std = jnp.std(x, axis=2, ddof=1)   # unbiased, matches torch.std default
    return jnp.concatenate([mean, std], axis=1)


if __name__ == "__main__":
    key = jax.random.PRNGKey(0)

    # Small case matching the module's (batch, feat, frames) convention.
    B, C, T = 2, 16, 32
    x = jax.random.normal(key, (B, C, T), dtype=jnp.float32)
    out = jax.block_until_ready(statistics_pooling(x))
    ref = statistics_pooling_ref(x)
    assert out.shape == (B, 2 * C), out.shape
    assert jnp.allclose(out, ref, atol=1e-5, rtol=1e-5), (
        float(jnp.max(jnp.abs(out - ref))))

    # Second case exercising streamed T-tiling + ragged last time tile +
    # ragged batch group (B=3, tb=2, no jnp.pad copy of x).
    B2, C2, T2 = 3, 16, 300
    x2 = jax.random.normal(jax.random.PRNGKey(1), (B2, C2, T2),
                           dtype=jnp.float32) * 3.0 + 5.0
    out2 = jax.block_until_ready(statistics_pooling(x2, tt=128))
    ref2 = statistics_pooling_ref(x2)
    assert out2.shape == (B2, 2 * C2), out2.shape
    assert jnp.allclose(out2, ref2, atol=1e-4, rtol=1e-4), (
        float(jnp.max(jnp.abs(out2 - ref2))))

    print("KERNEL_OK")
</pallas_src>

<mosaic_0001>
module attributes {stable_mosaic.version = 11 : i64} {
  func.func @_stats_pool_kernel(%arg0: i32, %arg1: i32, %arg2: memref<1x16x32xf32, #tpu.memory_space<vmem>>, %arg3: memref<1x2x16xf32, #tpu.memory_space<vmem>>, %arg4: memref<1x16xf32, #tpu.memory_space<vmem>>, %arg5: memref<1x16xf32, #tpu.memory_space<vmem>>, %arg6: memref<1x16x1xf32, #tpu.memory_space<vmem>>) attributes {dimension_semantics = [#tpu.dimension_semantics<parallel>, #tpu.dimension_semantics<arbitrary>], iteration_bounds = array<i64: 2, 1>, scalar_prefetch = 0 : i64, scratch_operands = 3 : i64, tpu.core_type = #tpu.core_type<tc>, window_params = [{transform_indices = @transform_0, window_bounds = array<i64: 1, 16, 32>}, {transform_indices = @transform_1, window_bounds = array<i64: 1, 2, 16>}]} {
    %c0 = arith.constant 0 : index
    %c0_0 = arith.constant 0 : index
    %c0_1 = arith.constant 0 : index
    %0 = vector.load %arg2[%c0, %c0_0, %c0_1] : memref<1x16x32xf32, #tpu.memory_space<vmem>>, vector<1x16x32xf32>
    %c0_i32 = arith.constant 0 : i32
    %1 = arith.cmpi eq, %arg1, %c0_i32 : i32
    %2 = arith.extui %1 : i1 to i32
    %c0_i32_2 = arith.constant 0 : i32
    %3 = arith.cmpi ne, %2, %c0_i32_2 : i32
    scf.if %3 {
      %cst_17 = arith.constant dense<0.000000e+00> : vector<1x16xf32>
      %19 = vector.multi_reduction <add>, %0, %cst_17 [2] : vector<1x16x32xf32> to vector<1x16xf32>
      %20 = vector.shape_cast %19 : vector<1x16xf32> to vector<1x16x1xf32>
      %cst_18 = arith.constant 3.200000e+01 : f32
      %21 = vector.broadcast %cst_18 : f32 to vector<1x16x1xf32>
      %22 = arith.divf %20, %21 : vector<1x16x1xf32>
      %c0_19 = arith.constant 0 : index
      %c0_20 = arith.constant 0 : index
      %c0_21 = arith.constant 0 : index
      %23 = vector.load %arg6[%c0_19, %c0_20, %c0_21] : memref<1x16x1xf32, #tpu.memory_space<vmem>>, vector<1x16x1xf32>
      tpu.vector_store %arg6[%c0_19, %c0_20, %c0_21], %22 {strides = array<i32>} : memref<1x16x1xf32, #tpu.memory_space<vmem>>, vector<1x16x1xf32>,
      %cst_22 = arith.constant 0.000000e+00 : f32
      %24 = vector.broadcast %cst_22 : f32 to vector<1x16xf32>
      %c0_23 = arith.constant 0 : index
      %c0_24 = arith.constant 0 : index
      %25 = vector.load %arg4[%c0_23, %c0_24] : memref<1x16xf32, #tpu.memory_space<vmem>>, vector<1x16xf32>
      tpu.vector_store %arg4[%c0_23, %c0_24], %24 {strides = array<i32>} : memref<1x16xf32, #tpu.memory_space<vmem>>, vector<1x16xf32>,
      %cst_25 = arith.constant 0.000000e+00 : f32
      %26 = vector.broadcast %cst_25 : f32 to vector<1x16xf32>
      %c0_26 = arith.constant 0 : index
      %c0_27 = arith.constant 0 : index
      %27 = vector.load %arg5[%c0_26, %c0_27] : memref<1x16xf32, #tpu.memory_space<vmem>>, vector<1x16xf32>
      tpu.vector_store %arg5[%c0_26, %c0_27], %26 {strides = array<i32>} : memref<1x16xf32, #tpu.memory_space<vmem>>, vector<1x16xf32>,
    } else {
    }
    %c0_3 = arith.constant 0 : index
    %c0_4 = arith.constant 0 : index
    %c0_5 = arith.constant 0 : index
    %4 = vector.load %arg6[%c0_3, %c0_4, %c0_5] : memref<1x16x1xf32, #tpu.memory_space<vmem>>, vector<1x16x1xf32>
    %5 = vector.broadcast %4 : vector<1x16x1xf32> to vector<1x16x32xf32>
    %6 = arith.subf %0, %5 : vector<1x16x32xf32>
    %c0_6 = arith.constant 0 : index
    %c0_7 = arith.constant 0 : index
    %7 = vector.load %arg4[%c0_6, %c0_7] : memref<1x16xf32, #tpu.memory_space<vmem>>, vector<1x16xf32>
    %cst = arith.constant dense<0.000000e+00> : vector<1x16xf32>
    %8 = vector.multi_reduction <add>, %6, %cst [2] : vector<1x16x32xf32> to vector<1x16xf32>
    %9 = arith.addf %7, %8 : vector<1x16xf32>
    %c0_8 = arith.constant 0 : index
    %c0_9 = arith.constant 0 : index
    %10 = vector.load %arg4[%c0_8, %c0_9] : memref<1x16xf32, #tpu.memory_space<vmem>>, vector<1x16xf32>
    tpu.vector_store %arg4[%c0_8, %c0_9], %9 {strides = array<i32>} : memref<1x16xf32, #tpu.memory_space<vmem>>, vector<1x16xf32>,
    %c0_10 = arith.constant 0 : index
    %c0_11 = arith.constant 0 : index
    %11 = vector.load %arg5[%c0_10, %c0_11] : memref<1x16xf32, #tpu.memory_space<vmem>>, vector<1x16xf32>
    %12 = arith.mulf %6, %6 : vector<1x16x32xf32>
    %cst_12 = arith.constant dense<0.000000e+00> : vector<1x16xf32>
    %13 = vector.multi_reduction <add>, %12, %cst_12 [2] : vector<1x16x32xf32> to vector<1x16xf32>
    %14 = arith.addf %11, %13 : vector<1x16xf32>
    %c0_13 = arith.constant 0 : index
    %c0_14 = arith.constant 0 : index
    %15 = vector.load %arg5[%c0_13, %c0_14] : memref<1x16xf32, #tpu.memory_space<vmem>>, vector<1x16xf32>
    tpu.vector_store %arg5[%c0_13, %c0_14], %14 {strides = array<i32>} : memref<1x16xf32, #tpu.memory_space<vmem>>, vector<1x16xf32>,
    %c0_i32_15 = arith.constant 0 : i32
    %16 = arith.cmpi eq, %arg1, %c0_i32_15 : i32
    %17 = arith.extui %16 : i1 to i32
    %c0_i32_16 = arith.constant 0 : i32
    %18 = arith.cmpi ne, %17, %c0_i32_16 : i32
    scf.if %18 {
      %c0_17 = arith.constant 0 : index
      %c0_18 = arith.constant 0 : index
      %19 = vector.load %arg4[%c0_17, %c0_18] : memref<1x16xf32, #tpu.memory_space<vmem>>, vector<1x16xf32>
      %c0_19 = arith.constant 0 : index
      %c0_20 = arith.constant 0 : index
      %20 = vector.load %arg5[%c0_19, %c0_20] : memref<1x16xf32, #tpu.memory_space<vmem>>, vector<1x16xf32>
      %c0_21 = arith.constant 0 : index
      %c0_22 = arith.constant 0 : index
      %c0_23 = arith.constant 0 : index
      %21 = vector.load %arg6[%c0_21, %c0_22, %c0_23] : memref<1x16x1xf32, #tpu.memory_space<vmem>>, vector<1x16x1xf32>
      %22 = vector.shape_cast %21 : vector<1x16x1xf32> to vector<1x16xf32>
      %cst_24 = arith.constant 3.200000e+01 : f32
      %23 = vector.broadcast %cst_24 : f32 to vector<1x16xf32>
      %24 = arith.divf %19, %23 : vector<1x16xf32>
      %25 = arith.addf %22, %24 : vector<1x16xf32>
      %26 = arith.mulf %19, %19 : vector<1x16xf32>
      %cst_25 = arith.constant 3.200000e+01 : f32
      %27 = vector.broadcast %cst_25 : f32 to vector<1x16xf32>
      %28 = arith.divf %26, %27 : vector<1x16xf32>
      %29 = arith.subf %20, %28 : vector<1x16xf32>
      %cst_26 = arith.constant 3.200000e+01 : f32
      %cst_27 = arith.constant 1.000000e+00 : f32
      %30 = arith.subf %cst_26, %cst_27 : f32
      %31 = vector.broadcast %30 : f32 to vector<1x16xf32>
      %32 = arith.divf %29, %31 : vector<1x16xf32>
      %cst_28 = arith.constant 0.000000e+00 : f32
      %33 = vector.broadcast %cst_28 : f32 to vector<1x16xf32>
      %34 = arith.maximumf %32, %33 : vector<1x16xf32>
      %35 = math.sqrt %34 : vector<1x16xf32>
      %36 = vector.shape_cast %25 : vector<1x16xf32> to vector<1x1x16xf32>
      %c0_29 = arith.constant 0 : index
      %c0_30 = arith.constant 0 : index
      %c0_31 = arith.constant 0 : index
      %37 = vector.load %arg3[%c0_29, %c0_30, %c0_31] : memref<1x2x16xf32, #tpu.memory_space<vmem>>, vector<1x1x16xf32>
      tpu.vector_store %arg3[%c0_29, %c0_30, %c0_31], %36 {strides = array<i32>} : memref<1x2x16xf32, #tpu.memory_space<vmem>>, vector<1x1x16xf32>,
      %38 = vector.shape_cast %35 : vector<1x16xf32> to vector<1x1x16xf32>
      %c0_32 = arith.constant 0 : index
      %c1 = arith.constant 1 : index
      %c0_33 = arith.constant 0 : index
      %39 = vector.load %arg3[%c0_32, %c1, %c0_33] : memref<1x2x16xf32, #tpu.memory_space<vmem>>, vector<1x1x16xf32>
      tpu.vector_store %arg3[%c0_32, %c1, %c0_33], %38 {strides = array<i32>} : memref<1x2x16xf32, #tpu.memory_space<vmem>>, vector<1x1x16xf32>,
    } else {
    }
    return
  }
  func.func @transform_0(%arg0: i32, %arg1: i32) -> (i32, i32, i32) {
    %c0_i32 = arith.constant 0 : i32
    %c0_i32_0 = arith.constant 0 : i32
    return %arg0, %c0_i32, %arg1 : i32, i32, i32
  }
  func.func @transform_1(%arg0: i32, %arg1: i32) -> (i32, i32, i32) {
    %c0_i32 = arith.constant 0 : i32
    %c0_i32_0 = arith.constant 0 : i32
    %c0_i32_1 = arith.constant 0 : i32
    return %arg0, %c0_i32, %c0_i32_0 : i32, i32, i32
  }
}

</mosaic_0001>

<llo_original>
// kernel: tpu_custom_call.1
$region0: #{tpu_custom_call.1}
  #allocation0 [shape = 'u32[]', space=smem, size = 0x4, offset = 0x4, fixed_abs, tag = 'smem constant byte address 0x4 - core index']
  #allocation1 [shape = 'u32[144,128]{1,0:T(1,128)}', space=vmem, size = 0x12000, scoped, tag = 'internal scratch']
  #allocation2 [shape = 'f32[1,16]{1,0:T(1,128)}', space=vmem, size = 0x200, scoped, tag = 'scratch operand']
  #allocation3 [shape = 'f32[1,16]{1,0:T(1,128)}', space=vmem, size = 0x200, scoped, tag = 'scratch operand']
  #allocation4 [shape = 'f32[1,16,1]{2,1,0:T(8,128)}', space=vmem, size = 0x2000, scoped, tag = 'scratch operand']
  %s0 = inlined_call_operand.hbm [shape: f32[2,16,32], index: 0, kind: input, shape index: {}]
  %s1 = inlined_call_operand.hbm [shape: f32[2,2,16], index: 1, kind: output, shape index: {}]
  %s2 = sld [smem:[#allocation0]]
  $region49: #{tpu_custom_call.1} parent=0
    _
  %s4 = ssub.s32 1, %s2
  %s5 = scalar_select 0, %s4, %s2
  $region1: #{tpu_custom_call.1} parent=0
    #allocation5 [shape = 'u8[16384]{0}', space=vmem, size = 0x4000, scoped, tag = 'input window, operand 0']
    #allocation6 [shape = 's32[2]{0}', space=sflag, size = 0x8, scoped, tag = 'scoped memory for tpu_custom_call.1']
    #allocation7 [shape = 's32[2]{0}', space=sflag, size = 0x8, scoped, tag = 'scoped memory for tpu_custom_call.1']
    #allocation8 [shape = 'u8[2048]{0}', space=vmem, size = 0x800, scoped, tag = 'output window, operand 0']
    %6 = vsyncpa [#allocation6], 0
    %s7 = scalar_lea.sflag [#allocation6], 1
    %8 = vsyncpa %s7, 0
    %9 = vsyncpa [#allocation7], 0
    %s10 = scalar_lea.sflag [#allocation7], 1
    %11 = vsyncpa %s10, 0
    loop: start=0, step=1, limit=4
    $region2: #{tpu_custom_call.1} parent=1 // loop_pre_header
      _
    $region3: #{tpu_custom_call.1} parent=1 // loop_header
      %s13 = sphi 0, %s17
      %p14 = scmp.ge.s32.totalorder %s13, 4
      %s20 = sphi 0, %s32
      %s21 = sphi 0, %s28
      %s22 = sphi 0, %s20
      %s23 = sphi 0, %s21
      %s24 = sphi 0, %s22
      %s25 = sphi 0, %s23
      %s37 = sphi 0, %s39
      %s40 = sphi 0, %s37
      %s41 = sphi 0, %s40
      %s57 = sphi 0, %s41
      %s63 = sphi 0, %s65
      %s66 = sphi 0, %s63
      %s67 = sphi 0, %s66
      %s83 = sphi 0, %s67
    $region4: #{tpu_custom_call.1} parent=1 // loop_header_branch
      %16 = sbr.rel (%p14) target = $region8
    $region5: #{tpu_custom_call.1} parent=1 // loop_body
      %s18 = ssub.s32 %s13, 1
      %s19 = ssub.s32 %s13, 2
      %s26 = sadd.s32 1, %s21
      %p27 = scmp.ge.s32.totalorder %s26, 1
      %s28 = scalar_select %p27, 0, %s26
      %s29 = sadd.s32 1, %s20
      %s30 = scalar_select %p27, %s29, %s20
      %p31 = scmp.ge.s32.totalorder %s30, 2
      %s32 = scalar_select %p31, 0, %s30
      %s33 = ssub.s32 %s20, %s32
      %s34 = ssub.s32 %s21, %s28
      %s35 = sor.u32 %s33, %s34
      %p36 = scmp.eq.s32.totalorder %s35, 0
      %s38 = sadd.s32 %s37, 1
      %s39 = scalar_select %p36, %s37, %s38
      %p42 = pneg %p36
      %p43 = scmp.eq.s32.totalorder %s13, 1
      %p44 = por %p42, %p43
      %p45 = scmp.ne.s32.totalorder %s37, %s40
      %p46 = scmp.eq.s32.totalorder %s13, 0
      %p47 = por %p45, %p46
      %p48 = scmp.ne.s32.totalorder %s37, %s40
      %p49 = scmp.eq.s32.totalorder %s18, 1
      %p50 = por %p48, %p49
      %p51 = scmp.ne.s32.totalorder %s40, %s41
      %p52 = scmp.eq.s32.totalorder %s18, 0
      %p53 = por %p51, %p52
      %p54 = scmp.ne.s32.totalorder %s40, %s41
      %p55 = scmp.eq.s32.totalorder %s19, 1
      %p56 = por %p54, %p55
      %p58 = scmp.ne.s32.totalorder %s41, %s57
      %p59 = scmp.eq.s32.totalorder %s19, 0
      %p60 = por %p58, %p59
      %s61 = ssub.s32 %s20, %s32
      %p62 = scmp.eq.s32.totalorder %s61, 0
      %s64 = sadd.s32 %s63, 1
      %s65 = scalar_select %p62, %s63, %s64
      %p68 = pneg %p62
      %p69 = scmp.eq.s32.totalorder %s13, 1
      %p70 = por %p68, %p69
      %p71 = scmp.ne.s32.totalorder %s63, %s66
      %p72 = scmp.eq.s32.totalorder %s13, 0
      %p73 = por %p71, %p72
      %p74 = scmp.ne.s32.totalorder %s63, %s66
      %p75 = scmp.eq.s32.totalorder %s18, 1
      %p76 = por %p74, %p75
      %p77 = scmp.ne.s32.totalorder %s66, %s67
      %p78 = scmp.eq.s32.totalorder %s18, 0
      %p79 = por %p77, %p78
      %p80 = scmp.ne.s32.totalorder %s66, %s67
      %p81 = scmp.eq.s32.totalorder %s19, 1
      %p82 = por %p80, %p81
      %p84 = scmp.ne.s32.totalorder %s67, %s83
      %p85 = scmp.eq.s32.totalorder %s19, 0
      %p86 = por %p84, %p85
      %p87 = scmp.le.s32.totalorder 1, %s13
      %p88 = scmp.lt.s32.totalorder %s13, 3
      %p89 = pnand %p87, %p88
      %p90 = pneg %p89
      // Predicated region
      $region9: #{tpu_custom_call.1} parent=5 // pred_check
        _
      $region10: #{tpu_custom_call.1} parent=5 // pred_check_branch
        %92 = sbr.rel (%p89) target = $region12
      $region11: #{tpu_custom_call.1} parent=5 // pred_region
        %s93 = ssub.s32 %s13, 1
      $region12: #{tpu_custom_call.1} parent=5 // pred_fallthru
        _
      %p94 = scmp.lt.s32.totalorder %s13, 2
      // Predicated region
      $region13: #{tpu_custom_call.1} parent=5 // pred_check
        %p95 = pneg %p94
      $region14: #{tpu_custom_call.1} parent=5 // pred_check_branch
        %97 = sbr.rel (%p95) target = $region16
      $region15: #{tpu_custom_call.1} parent=5 // pred_region
        // Predicated region
        $region17: #{tpu_custom_call.1} parent=15 // pred_check
          %p98 = pneg %p47
        $region18: #{tpu_custom_call.1} parent=15 // pred_check_branch
          %100 = sbr.rel (%p98) target = $region20
        $region19: #{tpu_custom_call.1} parent=15 // pred_region
          %s101 = sand.u32 %s37, 1
          %s102 = scalar_lea.sflag [#allocation6], %s101
          %s103 = sand.u32 %s37, 1
          %s104 = smul.addr %s103, 16
          %s105 = scalar_lea.vmem [#allocation5], %s104
          %s107 = ssub.s32 256, 256
          %108 = vsyncadd %s102, %s107
          %s109 = smul.addr %s20, 2
          %s110 = sadd.s32 %s21, %s109
          %s111 = smul.addr %s110, 128
          %s112 = scalar_lea.hbm %s0, %s111
          %s113 = sshll.u32 %s105, 4
          %s114 = int_to_ptr.vmem [resolvable:$true] %s113
          %119 = dma.hbm_to_vmem [thread:$0]  %s112, 256, %s114, %s102, 128, 128, 8
        $region20: #{tpu_custom_call.1} parent=15 // pred_fallthru
          _
      $region16: #{tpu_custom_call.1} parent=5 // pred_fallthru
        _
      %p120 = scmp.le.s32.totalorder 1, %s13
      %p121 = scmp.lt.s32.totalorder %s13, 3
      %p122 = pnand %p120, %p121
      %p123 = pneg %p122
      // Predicated region
      $region21: #{tpu_custom_call.1} parent=5 // pred_check
        _
      $region22: #{tpu_custom_call.1} parent=5 // pred_check_branch
        %125 = sbr.rel (%p122) target = $region24
      $region23: #{tpu_custom_call.1} parent=5 // pred_region
        %s126 = ssub.s32 %s13, 1
        %s127 = sand.u32 %s40, 1
        %s128 = scalar_lea.sflag [#allocation6], %s127
        %s129 = sand.u32 %s40, 1
        %s130 = smul.addr %s129, 16
        %s131 = scalar_lea.vmem [#allocation5], %s130
        // Predicated region
        $region25: #{tpu_custom_call.1} parent=23 // pred_check
          %p132 = pneg %p53
        $region26: #{tpu_custom_call.1} parent=23 // pred_check_branch
          %134 = sbr.rel (%p132) target = $region28
        $region27: #{tpu_custom_call.1} parent=23 // pred_region
          %135 = dma.done %s128, 256
        $region28: #{tpu_custom_call.1} parent=23 // pred_fallthru
          _
        %s136 = sand.u32 %s40, 1
        %s137 = scalar_lea.sflag [#allocation6], %s136
        %s138 = sand.u32 %s40, 1
        %s139 = smul.addr %s138, 16
        %s140 = scalar_lea.vmem [#allocation5], %s139
        %p141 = pneg %p53
        %p142 = pneg %p50
        %p143 = pneg %p79
        %p144 = pneg %p76
        %s145 = sand.u32 %s66, 1
        %s146 = scalar_lea.sflag [#allocation7], %s145
        %s147 = sand.u32 %s66, 1
        %s148 = smul.addr %s147, 2
        %s149 = scalar_lea.vmem [#allocation8], %s148
        %v150 = vld [vmem:[%s131] sm:$0xff]
        %v151 = vld [vmem:[%s131 + $0x8] sm:$0xff]
        %p152 = scmp.eq.s32.totalorder %s23, 0
        // Predicated region
        $region29: #{tpu_custom_call.1} parent=23 // pred_check
          %p153 = pneg %p152
        $region30: #{tpu_custom_call.1} parent=23 // pred_check_branch
          %155 = sbr.rel (%p153) target = $region32
        $region31: #{tpu_custom_call.1} parent=23 // pred_region
          %vm156 = vcmask 261120
          %v157 = vsel %vm156, %v150, 0.0
          %158 = vadd.xlane.f32.xlu0 %v157
          %v159 = vpop.xlane.xlu0 %158
          %v160 = vsel %vm156, %v151, 0.0
          %161 = vadd.xlane.f32.xlu0 %v160
          %v162 = vpop.xlane.xlu0 %161
          %v163 = vrcp.pop 32.0
          %v164 = vmul.f32 %v159, %v163
          %v165 = vmul.f32 %v162, %v163
          %vm166 = vcmask 7168
          %167 = vst.msk [vmem:[#allocation4] sm:$0xff] %vm166, %v164
          %168 = vst.msk [vmem:[#allocation4 + $0x8] sm:$0xff] %vm166, %v165
          %vm169 = vcmask 122880
          %170 = vst.msk [vmem:[#allocation2] sm:$0x1] %vm169, 0.0
          %171 = vst.msk [vmem:[#allocation3] sm:$0x1] %vm169, 0.0
        $region32: #{tpu_custom_call.1} parent=23 // pred_fallthru
          _
        %v172 = vld [vmem:[#allocation4] sm:$0xff]
        %v173 = vld [vmem:[#allocation4 + $0x8] sm:$0xff]
        %175 = vset.pattern.permute.xlu0 0
        %176 = vperm.xlu0 %175, %v172
        %v177 = vpop.permute.xlu0 %176
        %180 = vset.pattern.permute.xlu0 0
        %181 = vperm.xlu0 %180, %v173
        %v182 = vpop.permute.xlu0 %181
        %v184 = vsub.f32 %v150, %v177
        %v185 = vsub.f32 %v151, %v182
        %v186 = vld [vmem:[#allocation2] sm:$0x1]
        %vm187 = vcmask 261120
        %v188 = vsel %vm187, %v184, 0.0
        %189 = vadd.xlane.f32.xlu0 %v188
        %v190 = vpop.xlane.xlu0 %189
        %v191 = vsel %vm187, %v185, 0.0
        %192 = vadd.xlane.f32.xlu0 %v191
        %v193 = vpop.xlane.xlu0 %192
        %v196 = vlaneseq
        %v197 = vshrl.u32 %v196, 7
        %v198 = vsub.s32 0, %v197
        %v199 = vrot.slane %v190, %v198
        %v200 = vlaneseq
        %v201 = vshrl.u32 %v200, 7
        %v202 = vsub.s32 1, %v201
        %v203 = vrot.slane %v190, %v202
        %v204 = vlaneseq
        %v205 = vshrl.u32 %v204, 7
        %v206 = vsub.s32 2, %v205
        %v207 = vrot.slane %v190, %v206
        %v208 = vlaneseq
        %v209 = vshrl.u32 %v208, 7
        %v210 = vsub.s32 3, %v209
        %v211 = vrot.slane %v190, %v210
        %v212 = vlaneseq
        %v213 = vshrl.u32 %v212, 7
        %v214 = vsub.s32 4, %v213
        %v215 = vrot.slane %v190, %v214
        %v216 = vlaneseq
        %v217 = vshrl.u32 %v216, 7
        %v218 = vsub.s32 5, %v217
        %v219 = vrot.slane %v190, %v218
        %v220 = vlaneseq
        %v221 = vshrl.u32 %v220, 7
        %v222 = vsub.s32 6, %v221
        %v223 = vrot.slane %v190, %v222
        %v224 = vlaneseq
        %v225 = vshrl.u32 %v224, 7
        %v226 = vsub.s32 7, %v225
        %v227 = vrot.slane %v190, %v226
        %v228 = vlaneseq
        %v229 = vshrl.u32 %v228, 7
        %v230 = vsub.s32 0, %v229
        %v231 = vrot.slane %v193, %v230
        %v232 = vlaneseq
        %v233 = vshrl.u32 %v232, 7
        %v234 = vsub.s32 1, %v233
        %v235 = vrot.slane %v193, %v234
        %v236 = vlaneseq
        %v237 = vshrl.u32 %v236, 7
        %v238 = vsub.s32 2, %v237
        %v239 = vrot.slane %v193, %v238
        %v240 = vlaneseq
        %v241 = vshrl.u32 %v240, 7
        %v242 = vsub.s32 3, %v241
        %v243 = vrot.slane %v193, %v242
        %v244 = vlaneseq
        %v245 = vshrl.u32 %v244, 7
        %v246 = vsub.s32 4, %v245
        %v247 = vrot.slane %v193, %v246
        %v248 = vlaneseq
        %v249 = vshrl.u32 %v248, 7
        %v250 = vsub.s32 5, %v249
        %v251 = vrot.slane %v193, %v250
        %v252 = vlaneseq
        %v253 = vshrl.u32 %v252, 7
        %v254 = vsub.s32 6, %v253
        %v255 = vrot.slane %v193, %v254
        %v256 = vlaneseq
        %v257 = vshrl.u32 %v256, 7
        %v258 = vsub.s32 7, %v257
        %v259 = vrot.slane %v193, %v258
        %v260 = vcombine.low %v199, %v203
        %v261 = vcombine.low %v207, %v211
        %v262 = vcombine.low %v215, %v219
        %v263 = vcombine.low %v223, %v227
        %v265 = vunpack.c.l.s4 1966171168
        %v266 = vunpack.c.0.s8 %v265
        %v267 = vlaneseq
        %v268 = vshrl.u32 %v267, 7
        %v269 = vsub.s32 %v266, %v268
        %v270 = vrot.slane %v260, %v269
        %v272 = vunpack.c.l.s4 1966171168
        %v273 = vunpack.c.0.s8 %v272
        %v274 = vlaneseq
        %v275 = vshrl.u32 %v274, 7
        %v276 = vsub.s32 %v273, %v275
        %v277 = vrot.slane %v261, %v276
        %v279 = vunpack.c.l.s4 1966171168
        %v280 = vunpack.c.0.s8 %v279
        %v281 = vlaneseq
        %v282 = vshrl.u32 %v281, 7
        %v283 = vsub.s32 %v280, %v282
        %v284 = vrot.slane %v262, %v283
        %v286 = vunpack.c.l.s4 1966171168
        %v287 = vunpack.c.0.s8 %v286
        %v288 = vlaneseq
        %v289 = vshrl.u32 %v288, 7
        %v290 = vsub.s32 %v287, %v289
        %v291 = vrot.slane %v263, %v290
        %v292 = vcombine.low %v270, %v277
        %v293 = vcombine.low %v284, %v291
        %v295 = vunpack.c.l.s4 1966171168
        %v296 = vunpack.c.0.s8 %v295
        %v297 = vlaneseq
        %v298 = vshrl.u32 %v297, 7
        %v299 = vsub.s32 %v296, %v298
        %v300 = vrot.slane %v292, %v299
        %v302 = vunpack.c.l.s4 1966171168
        %v303 = vunpack.c.0.s8 %v302
        %v304 = vlaneseq
        %v305 = vshrl.u32 %v304, 7
        %v306 = vsub.s32 %v303, %v305
        %v307 = vrot.slane %v293, %v306
        %v308 = vcombine.low %v300, %v307
        %v309 = vcombine.low %v231, %v235
        %v310 = vcombine.low %v239, %v243
        %v311 = vcombine.low %v247, %v251
        %v312 = vcombine.low %v255, %v259
        %v314 = vunpack.c.l.s4 1966171168
        %v315 = vunpack.c.0.s8 %v314
        %v316 = vlaneseq
        %v317 = vshrl.u32 %v316, 7
        %v318 = vsub.s32 %v315, %v317
        %v319 = vrot.slane %v309, %v318
        %v321 = vunpack.c.l.s4 1966171168
        %v322 = vunpack.c.0.s8 %v321
        %v323 = vlaneseq
        %v324 = vshrl.u32 %v323, 7
        %v325 = vsub.s32 %v322, %v324
        %v326 = vrot.slane %v310, %v325
        %v328 = vunpack.c.l.s4 1966171168
        %v329 = vunpack.c.0.s8 %v328
        %v330 = vlaneseq
        %v331 = vshrl.u32 %v330, 7
        %v332 = vsub.s32 %v329, %v331
        %v333 = vrot.slane %v311, %v332
        %v335 = vunpack.c.l.s4 1966171168
        %v336 = vunpack.c.0.s8 %v335
        %v337 = vlaneseq
        %v338 = vshrl.u32 %v337, 7
        %v339 = vsub.s32 %v336, %v338
        %v340 = vrot.slane %v312, %v339
        %v341 = vcombine.low %v319, %v326
        %v342 = vcombine.low %v333, %v340
        %v344 = vunpack.c.l.s4 1966171168
        %v345 = vunpack.c.0.s8 %v344
        %v346 = vlaneseq
        %v347 = vshrl.u32 %v346, 7
        %v348 = vsub.s32 %v345, %v347
        %v349 = vrot.slane %v341, %v348
        %v351 = vunpack.c.l.s4 1966171168
        %v352 = vunpack.c.0.s8 %v351
        %v353 = vlaneseq
        %v354 = vshrl.u32 %v353, 7
        %v355 = vsub.s32 %v352, %v354
        %v356 = vrot.slane %v342, %v355
        %v357 = vcombine.low %v349, %v356
        %358 = vset.pattern.permute.xlu0 0
        %359 = vperm.xlu0 %358, %v308
        %v360 = vpop.permute.xlu0 %359
        %361 = vset.pattern.permute.xlu0 0
        %362 = vperm.xlu0 %361, %v357
        %v363 = vpop.permute.xlu0 %362
        %v364 = vlaneseq
        %v365 = vand.u32 %v364, 127
        %v366 = vlaneseq
        %v367 = vshrl.u32 %v366, 7
        %v368 = vsub.s32 %v365, %v367
        %v369 = vrot.slane %v360, %v368
        %v370 = vadd.s32 %v365, 4294967288
        %v371 = vlaneseq
        %v372 = vshrl.u32 %v371, 7
        %v373 = vsub.s32 %v370, %v372
        %v374 = vrot.slane %v363, %v373
        %vm375 = vcmask 130112
        %v376 = vsel %vm375, %v374, %v369
        %v378 = vunpack.c.l.s4 1966171168
        %v379 = vunpack.c.0.s8 %v378
        %v380 = vlaneseq
        %v381 = vshrl.u32 %v380, 7
        %v382 = vsub.s32 %v379, %v381
        %v383 = vrot.slane %v376, %v382
        %v385 = vunpack.c.l.s4 1966171168
        %v386 = vunpack.c.0.s8 %v385
        %v387 = vlaneseq
        %v388 = vshrl.u32 %v387, 7
        %v389 = vsub.s32 %v386, %v388
        %v390 = vrot.slane %v383, %v389
        %v392 = vadd.f32 %v186, %v390
        %vm393 = vcmask 122880
        %394 = vst.msk [vmem:[#allocation2] sm:$0x1] %vm393, %v392
        %v395 = vld [vmem:[#allocation3] sm:$0x1]
        %v396 = vmul.f32 %v184, %v184
        %v397 = vmul.f32 %v185, %v185
        %v398 = vsel %vm187, %v396, 0.0
        %399 = vadd.xlane.f32.xlu0 %v398
        %v400 = vpop.xlane.xlu0 %399
        %v401 = vsel %vm187, %v397, 0.0
        %402 = vadd.xlane.f32.xlu0 %v401
        %v403 = vpop.xlane.xlu0 %402
        %v406 = vlaneseq
        %v407 = vshrl.u32 %v406, 7
        %v408 = vsub.s32 0, %v407
        %v409 = vrot.slane %v400, %v408
        %v410 = vlaneseq
        %v411 = vshrl.u32 %v410, 7
        %v412 = vsub.s32 1, %v411
        %v413 = vrot.slane %v400, %v412
        %v414 = vlaneseq
        %v415 = vshrl.u32 %v414, 7
        %v416 = vsub.s32 2, %v415
        %v417 = vrot.slane %v400, %v416
        %v418 = vlaneseq
        %v419 = vshrl.u32 %v418, 7
        %v420 = vsub.s32 3, %v419
        %v421 = vrot.slane %v400, %v420
        %v422 = vlaneseq
        %v423 = vshrl.u32 %v422, 7
        %v424 = vsub.s32 4, %v423
        %v425 = vrot.slane %v400, %v424
        %v426 = vlaneseq
        %v427 = vshrl.u32 %v426, 7
        %v428 = vsub.s32 5, %v427
        %v429 = vrot.slane %v400, %v428
        %v430 = vlaneseq
        %v431 = vshrl.u32 %v430, 7
        %v432 = vsub.s32 6, %v431
        %v433 = vrot.slane %v400, %v432
        %v434 = vlaneseq
        %v435 = vshrl.u32 %v434, 7
        %v436 = vsub.s32 7, %v435
        %v437 = vrot.slane %v400, %v436
        %v438 = vlaneseq
        %v439 = vshrl.u32 %v438, 7
        %v440 = vsub.s32 0, %v439
        %v441 = vrot.slane %v403, %v440
        %v442 = vlaneseq
        %v443 = vshrl.u32 %v442, 7
        %v444 = vsub.s32 1, %v443
        %v445 = vrot.slane %v403, %v444
        %v446 = vlaneseq
        %v447 = vshrl.u32 %v446, 7
        %v448 = vsub.s32 2, %v447
        %v449 = vrot.slane %v403, %v448
        %v450 = vlaneseq
        %v451 = vshrl.u32 %v450, 7
        %v452 = vsub.s32 3, %v451
        %v453 = vrot.slane %v403, %v452
        %v454 = vlaneseq
        %v455 = vshrl.u32 %v454, 7
        %v456 = vsub.s32 4, %v455
        %v457 = vrot.slane %v403, %v456
        %v458 = vlaneseq
        %v459 = vshrl.u32 %v458, 7
        %v460 = vsub.s32 5, %v459
        %v461 = vrot.slane %v403, %v460
        %v462 = vlaneseq
        %v463 = vshrl.u32 %v462, 7
        %v464 = vsub.s32 6, %v463
        %v465 = vrot.slane %v403, %v464
        %v466 = vlaneseq
        %v467 = vshrl.u32 %v466, 7
        %v468 = vsub.s32 7, %v467
        %v469 = vrot.slane %v403, %v468
        %v470 = vcombine.low %v409, %v413
        %v471 = vcombine.low %v417, %v421
        %v472 = vcombine.low %v425, %v429
        %v473 = vcombine.low %v433, %v437
        %v475 = vunpack.c.l.s4 1966171168
        %v476 = vunpack.c.0.s8 %v475
        %v477 = vlaneseq
        %v478 = vshrl.u32 %v477, 7
        %v479 = vsub.s32 %v476, %v478
        %v480 = vrot.slane %v470, %v479
        %v482 = vunpack.c.l.s4 1966171168
        %v483 = vunpack.c.0.s8 %v482
        %v484 = vlaneseq
        %v485 = vshrl.u32 %v484, 7
        %v486 = vsub.s32 %v483, %v485
        %v487 = vrot.slane %v471, %v486
        %v489 = vunpack.c.l.s4 1966171168
        %v490 = vunpack.c.0.s8 %v489
        %v491 = vlaneseq
        %v492 = vshrl.u32 %v491, 7
        %v493 = vsub.s32 %v490, %v492
        %v494 = vrot.slane %v472, %v493
        %v496 = vunpack.c.l.s4 1966171168
        %v497 = vunpack.c.0.s8 %v496
        %v498 = vlaneseq
        %v499 = vshrl.u32 %v498, 7
        %v500 = vsub.s32 %v497, %v499
        %v501 = vrot.slane %v473, %v500
        %v502 = vcombine.low %v480, %v487
        %v503 = vcombine.low %v494, %v501
        %v505 = vunpack.c.l.s4 1966171168
        %v506 = vunpack.c.0.s8 %v505
        %v507 = vlaneseq
        %v508 = vshrl.u32 %v507, 7
        %v509 = vsub.s32 %v506, %v508
        %v510 = vrot.slane %v502, %v509
        %v512 = vunpack.c.l.s4 1966171168
        %v513 = vunpack.c.0.s8 %v512
        %v514 = vlaneseq
        %v515 = vshrl.u32 %v514, 7
        %v516 = vsub.s32 %v513, %v515
        %v517 = vrot.slane %v503, %v516
        %v518 = vcombine.low %v510, %v517
        %v519 = vcombine.low %v441, %v445
        %v520 = vcombine.low %v449, %v453
        %v521 = vcombine.low %v457, %v461
        %v522 = vcombine.low %v465, %v469
        %v524 = vunpack.c.l.s4 1966171168
        %v525 = vunpack.c.0.s8 %v524
        %v526 = vlaneseq
        %v527 = vshrl.u32 %v526, 7
        %v528 = vsub.s32 %v525, %v527
        %v529 = vrot.slane %v519, %v528
        %v531 = vunpack.c.l.s4 1966171168
        %v532 = vunpack.c.0.s8 %v531
        %v533 = vlaneseq
        %v534 = vshrl.u32 %v533, 7
        %v535 = vsub.s32 %v532, %v534
        %v536 = vrot.slane %v520, %v535
        %v538 = vunpack.c.l.s4 1966171168
        %v539 = vunpack.c.0.s8 %v538
        %v540 = vlaneseq
        %v541 = vshrl.u32 %v540, 7
        %v542 = vsub.s32 %v539, %v541
        %v543 = vrot.slane %v521, %v542
        %v545 = vunpack.c.l.s4 1966171168
        %v546 = vunpack.c.0.s8 %v545
        %v547 = vlaneseq
        %v548 = vshrl.u32 %v547, 7
        %v549 = vsub.s32 %v546, %v548
        %v550 = vrot.slane %v522, %v549
        %v551 = vcombine.low %v529, %v536
        %v552 = vcombine.low %v543, %v550
        %v554 = vunpack.c.l.s4 1966171168
        %v555 = vunpack.c.0.s8 %v554
        %v556 = vlaneseq
        %v557 = vshrl.u32 %v556, 7
        %v558 = vsub.s32 %v555, %v557
        %v559 = vrot.slane %v551, %v558
        %v561 = vunpack.c.l.s4 1966171168
        %v562 = vunpack.c.0.s8 %v561
        %v563 = vlaneseq
        %v564 = vshrl.u32 %v563, 7
        %v565 = vsub.s32 %v562, %v564
        %v566 = vrot.slane %v552, %v565
        %v567 = vcombine.low %v559, %v566
        %568 = vset.pattern.permute.xlu0 0
        %569 = vperm.xlu0 %568, %v518
        %v570 = vpop.permute.xlu0 %569
        %571 = vset.pattern.permute.xlu0 0
        %572 = vperm.xlu0 %571, %v567
        %v573 = vpop.permute.xlu0 %572
        %v574 = vlaneseq
        %v575 = vshrl.u32 %v574, 7
        %v576 = vsub.s32 %v365, %v575
        %v577 = vrot.slane %v570, %v576
        %v578 = vlaneseq
        %v579 = vshrl.u32 %v578, 7
        %v580 = vsub.s32 %v370, %v579
        %v581 = vrot.slane %v573, %v580
        %v582 = vsel %vm375, %v581, %v577
        %v584 = vunpack.c.l.s4 1966171168
        %v585 = vunpack.c.0.s8 %v584
        %v586 = vlaneseq
        %v587 = vshrl.u32 %v586, 7
        %v588 = vsub.s32 %v585, %v587
        %v589 = vrot.slane %v582, %v588
        %v591 = vunpack.c.l.s4 1966171168
        %v592 = vunpack.c.0.s8 %v591
        %v593 = vlaneseq
        %v594 = vshrl.u32 %v593, 7
        %v595 = vsub.s32 %v592, %v594
        %v596 = vrot.slane %v589, %v595
        %v598 = vadd.f32 %v395, %v596
        %599 = vst.msk [vmem:[#allocation3] sm:$0x1] %vm393, %v598
        // Predicated region
        $region33: #{tpu_custom_call.1} parent=23 // pred_check
          %p600 = pneg %p152
        $region34: #{tpu_custom_call.1} parent=23 // pred_check_branch
          %602 = sbr.rel (%p600) target = $region36
        $region35: #{tpu_custom_call.1} parent=23 // pred_region
          %v603 = vld [vmem:[#allocation2] sm:$0x1]
          %v604 = vld [vmem:[#allocation3] sm:$0x1]
          %v605 = vld [vmem:[#allocation4] sm:$0xff]
          %v606 = vld [vmem:[#allocation4 + $0x8] sm:$0xff]
          %v607 = vrcp.pop 32.0
          %v608 = vmul.f32 %v603, %v607
          %v610 = vlaneseq
          %v611 = vshrl.u32 %v610, 7
          %v612 = vsub.s32 0, %v611
          %v613 = vrot.slane %v608, %v612
          %615 = vbcast.lane.b32.xlu0 %v613, 256
          %v616 = vpop.permute.xlu0 %615
          %s618 = sor.u32 256, 8
          %619 = vbcast.lane.b32.xlu0 %v613, %s618
          %v620 = vpop.permute.xlu0 %619
          %v623 = vadd.f32 %v605, %v616
          %v624 = vadd.f32 %v606, %v620
          %v625 = vmul.f32 %v603, %v603
          %v626 = vmul.f32 %v625, %v607
          %v627 = vsub.f32 %v604, %v626
          %v628 = vrcp.pop 31.0
          %v629 = vmul.f32 %v627, %v628
          %v630 = vmax.f32 %v629, 0.0
          %v631 = vrsqrt.pop %v630
          %v632 = vmul.f32 %v630, %v631
          %vm633 = vcmp.eq.f32.partialorder %v630, inf
          %v634 = vsel %vm633, %v630, %v632
          %vm635 = vcmp.eq.f32.partialorder %v630, 0.0
          %v636 = vand.u32 %v630, 2147483648
          %v637 = vsel %vm635, %v636, %v634
          %640 = vset.pattern.permute.xlu0 0
          %641 = vperm.xlu0 %640, %v623
          %v642 = vpop.permute.xlu0 %641
          %643 = vset.pattern.permute.xlu0 0
          %644 = vperm.xlu0 %643, %v624
          %v645 = vpop.permute.xlu0 %644
          %v646 = vlaneseq
          %v647 = vshrl.u32 %v646, 7
          %v648 = vsub.s32 %v365, %v647
          %v649 = vrot.slane %v642, %v648
          %v650 = vlaneseq
          %v651 = vshrl.u32 %v650, 7
          %v652 = vsub.s32 %v370, %v651
          %v653 = vrot.slane %v645, %v652
          %v654 = vsel %vm375, %v653, %v649
          %656 = vst.msk [vmem:[%s149] sm:$0x1] %vm393, %v654
          %657 = vst.msk [vmem:[%s149 + $0x1] sm:$0x1] %vm393, %v637
        $region36: #{tpu_custom_call.1} parent=23 // pred_fallthru
          _
        %s658 = sand.u32 %s66, 1
        %s659 = scalar_lea.sflag [#allocation7], %s658
        %s660 = sand.u32 %s66, 1
        %s661 = smul.addr %s660, 2
        %s662 = scalar_lea.vmem [#allocation8], %s661
        // Predicated region
        $region37: #{tpu_custom_call.1} parent=23 // pred_check
          %p663 = pneg %p76
        $region38: #{tpu_custom_call.1} parent=23 // pred_check_branch
          %665 = sbr.rel (%p663) target = $region40
        $region39: #{tpu_custom_call.1} parent=23 // pred_region
          %s667 = ssub.s32 32, 32
          %668 = vsyncadd %s659, %s667
          %s669 = smul.addr %s22, 32
          %s670 = scalar_lea.hbm %s1, %s669
          %s672 = sshll.u32 %s662, 4
          %s673 = int_to_ptr.vmem [resolvable:$true] %s672
          %675 = dma.vmem_to_hbm [thread:$0]  %s673, 32, %s670, %s659
        $region40: #{tpu_custom_call.1} parent=23 // pred_fallthru
          _
      $region24: #{tpu_custom_call.1} parent=5 // pred_fallthru
        _
      %p676 = scmp.le.s32.totalorder 2, %s13
      // Predicated region
      $region41: #{tpu_custom_call.1} parent=5 // pred_check
        %p677 = pneg %p676
      $region42: #{tpu_custom_call.1} parent=5 // pred_check_branch
        %679 = sbr.rel (%p677) target = $region44
      $region43: #{tpu_custom_call.1} parent=5 // pred_region
        %s680 = ssub.s32 %s13, 2
        // Predicated region
        $region45: #{tpu_custom_call.1} parent=43 // pred_check
          %p681 = pneg %p82
        $region46: #{tpu_custom_call.1} parent=43 // pred_check_branch
          %683 = sbr.rel (%p681) target = $region48
        $region47: #{tpu_custom_call.1} parent=43 // pred_region
          %s684 = sand.u32 %s67, 1
          %s685 = scalar_lea.sflag [#allocation7], %s684
          %s686 = sand.u32 %s67, 1
          %s687 = smul.addr %s686, 2
          %s688 = scalar_lea.vmem [#allocation8], %s687
          %689 = dma.done %s685, 32
        $region48: #{tpu_custom_call.1} parent=43 // pred_fallthru
          _
      $region44: #{tpu_custom_call.1} parent=5 // pred_fallthru
        _
    $region6: #{tpu_custom_call.1} parent=1 // loop_footer
      %s17 = sadd.s32 1, %s13
    $region7: #{tpu_custom_call.1} parent=1 // loop_footer_branch
      %12 = sbr.rel target = $region3
    $region8: #{tpu_custom_call.1} parent=1 // loop_exit
      _
    %690 = vsyncpa [#allocation6], 1
    %s691 = scalar_lea.sflag [#allocation6], 1
    %692 = vsyncpa %s691, 1
    %693 = vsyncpa [#allocation7], 1
    %s694 = scalar_lea.sflag [#allocation7], 1
    %695 = vsyncpa %s694, 1

</llo_original>
